<compile_context>
chip_gen: v5e
topology: v5e:2x2
jax: 0.10.0
libtpu: 0.0.40
codegen_flags: <defaults>
</compile_context>

<pallas_src>
import jax
import jax.numpy as jnp
from jax.experimental import pallas as pl
from jax.experimental.pallas import tpu as pltpu

SPLIT = 3  # first output takes channels [0, 3), second takes [3, C)


def split_kernel(x_ref, o1_ref, o2_ref):
    # x_ref : VMEM (B, C, HW)
    # o1_ref: VMEM (B, SPLIT, HW)
    # o2_ref: VMEM (B, C - SPLIT, HW)
    o1_ref[...] = x_ref[:, :SPLIT, :]
    o2_ref[...] = x_ref[:, SPLIT:, :]


def split(x, *, batch_block=None):
    """x: (N, C, H, W). Returns {3: x[:, :3], 1: x[:, 3:]} like the PyTorch module."""
    N, C, H, W = x.shape
    assert C > SPLIT, f"need more than {SPLIT} channels, got {C}"
    HW = H * W
    x2d = x.reshape(N, C, HW)  # lane-dense last dim

    if batch_block is None:
        # Largest batch block whose double-buffered input stays under ~4 MiB.
        bytes_per_img = C * HW * x.dtype.itemsize
        batch_block = max(1, min(N, (4 << 20) // (2 * max(1, bytes_per_img))))
        while N % batch_block:
            batch_block -= 1
    assert N % batch_block == 0
    grid = (N // batch_block,)

    o1, o2 = pl.pallas_call(
        split_kernel,
        out_shape=(
            jax.ShapeDtypeStruct((N, SPLIT, HW), x.dtype),
            jax.ShapeDtypeStruct((N, C - SPLIT, HW), x.dtype),
        ),
        grid_spec=pltpu.PrefetchScalarGridSpec(
            num_scalar_prefetch=0,
            grid=grid,
            in_specs=[pl.BlockSpec((batch_block, C, HW), lambda n: (n, 0, 0))],
            out_specs=(
                pl.BlockSpec((batch_block, SPLIT, HW), lambda n: (n, 0, 0)),
                pl.BlockSpec((batch_block, C - SPLIT, HW), lambda n: (n, 0, 0)),
            ),
        ),
        compiler_params=pltpu.CompilerParams(dimension_semantics=("parallel",)),
    )(x2d)

    return {3: o1.reshape(N, SPLIT, H, W), 1: o2.reshape(N, C - SPLIT, H, W)}


def reference(x):
    """Pure-JAX reference mirroring the PyTorch forward."""
    return {3: x[:, :SPLIT, :, :], 1: x[:, SPLIT:, :, :]}


if __name__ == "__main__":
    key = jax.random.PRNGKey(0)
    N, C, H, W = 2, 4, 16, 16
    x = jax.random.normal(key, (N, C, H, W), dtype=jnp.float32)

    out = split(x)
    jax.block_until_ready(out)
    ref = reference(x)

    assert out[3].shape == (N, SPLIT, H, W), out[3].shape
    assert out[1].shape == (N, C - SPLIT, H, W), out[1].shape
    assert jnp.array_equal(out[3], ref[3]), float(jnp.max(jnp.abs(out[3] - ref[3])))
    assert jnp.array_equal(out[1], ref[1]), float(jnp.max(jnp.abs(out[1] - ref[1])))
    print("KERNEL_OK")
</pallas_src>

<mosaic_0001>
module attributes {stable_mosaic.version = 11 : i64} {
  func.func @split_kernel(%arg0: i32, %arg1: memref<2x4x256xf32, #tpu.memory_space<vmem>>, %arg2: memref<2x3x256xf32, #tpu.memory_space<vmem>>, %arg3: memref<2x1x256xf32, #tpu.memory_space<vmem>>) attributes {dimension_semantics = [#tpu.dimension_semantics<parallel>], iteration_bounds = array<i64: 1>, scalar_prefetch = 0 : i64, scratch_operands = 0 : i64, tpu.core_type = #tpu.core_type<tc>, window_params = [{transform_indices = @transform_0, window_bounds = array<i64: 2, 4, 256>}, {transform_indices = @transform_1, window_bounds = array<i64: 2, 3, 256>}, {transform_indices = @transform_2, window_bounds = array<i64: 2, 1, 256>}]} {
    %c0 = arith.constant 0 : index
    %c0_0 = arith.constant 0 : index
    %c0_1 = arith.constant 0 : index
    %0 = vector.load %arg1[%c0, %c0_0, %c0_1] : memref<2x4x256xf32, #tpu.memory_space<vmem>>, vector<2x3x256xf32>
    %c0_2 = arith.constant 0 : index
    %c0_3 = arith.constant 0 : index
    %c0_4 = arith.constant 0 : index
    %1 = vector.load %arg2[%c0_2, %c0_3, %c0_4] : memref<2x3x256xf32, #tpu.memory_space<vmem>>, vector<2x3x256xf32>
    tpu.vector_store %arg2[%c0_2, %c0_3, %c0_4], %0 {strides = array<i32>} : memref<2x3x256xf32, #tpu.memory_space<vmem>>, vector<2x3x256xf32>,
    %c0_5 = arith.constant 0 : index
    %c3 = arith.constant 3 : index
    %c0_6 = arith.constant 0 : index
    %2 = vector.load %arg1[%c0_5, %c3, %c0_6] : memref<2x4x256xf32, #tpu.memory_space<vmem>>, vector<2x1x256xf32>
    %c0_7 = arith.constant 0 : index
    %c0_8 = arith.constant 0 : index
    %c0_9 = arith.constant 0 : index
    %3 = vector.load %arg3[%c0_7, %c0_8, %c0_9] : memref<2x1x256xf32, #tpu.memory_space<vmem>>, vector<2x1x256xf32>
    tpu.vector_store %arg3[%c0_7, %c0_8, %c0_9], %2 {strides = array<i32>} : memref<2x1x256xf32, #tpu.memory_space<vmem>>, vector<2x1x256xf32>,
    return
  }
  func.func @transform_0(%arg0: i32) -> (i32, i32, i32) {
    %c0_i32 = arith.constant 0 : i32
    %c0_i32_0 = arith.constant 0 : i32
    %c0_i32_1 = arith.constant 0 : i32
    return %arg0, %c0_i32, %c0_i32_0 : i32, i32, i32
  }
  func.func @transform_1(%arg0: i32) -> (i32, i32, i32) {
    %c0_i32 = arith.constant 0 : i32
    %c0_i32_0 = arith.constant 0 : i32
    %c0_i32_1 = arith.constant 0 : i32
    return %arg0, %c0_i32, %c0_i32_0 : i32, i32, i32
  }
  func.func @transform_2(%arg0: i32) -> (i32, i32, i32) {
    %c0_i32 = arith.constant 0 : i32
    %c0_i32_0 = arith.constant 0 : i32
    %c0_i32_1 = arith.constant 0 : i32
    return %arg0, %c0_i32, %c0_i32_0 : i32, i32, i32
  }
}

</mosaic_0001>

<llo_original>
// kernel: tpu_custom_call.1
$region0: #{tpu_custom_call.1}
  #allocation0 [shape = 'u32[]', space=smem, size = 0x4, offset = 0x4, fixed_abs, tag = 'smem constant byte address 0x4 - core index']
  #allocation1 [shape = 'u32[72,128]{1,0:T(1,128)}', space=vmem, size = 0x9000, scoped, tag = 'internal scratch']
  %s0 = inlined_call_operand.hbm [shape: f32[2,4,256], index: 0, kind: input, shape index: {}]
  %s1 = inlined_call_operand.vmem [shape: f32[2,3,256], index: 1, kind: output, shape index: {0}]
  %s2 = inlined_call_operand.hbm [shape: f32[2,1,256], index: 2, kind: output, shape index: {1}]
  %3 = xla_tuple %s1, %s2
  %s4 = sld [smem:[#allocation0]]
  $region26: #{tpu_custom_call.1} parent=0
    _
  %s6 = ssub.s32 1, %s4
  %s7 = scalar_select 0, %s6, %s4
  $region1: #{tpu_custom_call.1} parent=0
    #allocation2 [shape = 'u8[8192]{0}', space=vmem, size = 0x2000, scoped, tag = 'input window, operand 0, single buffered']
    #allocation3 [shape = 's32[1]{0}', space=sflag, size = 0x4, scoped, tag = 'scoped memory for tpu_custom_call.1']
    #allocation4 [shape = 's32[1]{0}', space=sflag, size = 0x4, scoped, tag = 'scoped memory for tpu_custom_call.1']
    #allocation5 [shape = 'u8[2048]{0}', space=vmem, size = 0x800, scoped, tag = 'output window, operand 1, single buffered']
    %8 = vsyncpa [#allocation3], 0
    %9 = vsyncpa [#allocation4], 0
    // Predicated region
    $region2: #{tpu_custom_call.1} parent=1 // pred_check
      _
    $region3: #{tpu_custom_call.1} parent=1 // pred_check_branch
      %11 = sbr.rel (0) target = $region5
    $region4: #{tpu_custom_call.1} parent=1 // pred_region
      %13 = vsyncadd [#allocation3], 0
      %s14 = sshll.u32 %s0, 4
      %s15 = int_to_ptr.hbm [resolvable:$true] %s14
      %s16 = sshll.u32 [#allocation2], 4
      %s17 = int_to_ptr.vmem [resolvable:$true] %s16
      %22 = dma.hbm_to_vmem [thread:$0]  %s15, 256, %s17, [#allocation3], 128, 128, 8
    $region5: #{tpu_custom_call.1} parent=1 // pred_fallthru
      _
    // Predicated region
    $region6: #{tpu_custom_call.1} parent=1 // pred_check
      _
    $region7: #{tpu_custom_call.1} parent=1 // pred_check_branch
      %24 = sbr.rel (0) target = $region9
    $region8: #{tpu_custom_call.1} parent=1 // pred_region
      %26 = dma.done [#allocation3], 256
    $region9: #{tpu_custom_call.1} parent=1 // pred_fallthru
      _
    %v27 = vld [vmem:[#allocation2] sm:$0x77]
    %v28 = vld [vmem:[#allocation2 + $0x8] sm:$0x77]
    %29 = vst [vmem:[%s1] sm:$0x77] %v27
    %30 = vst [vmem:[%s1 + $0x8] sm:$0x77] %v28
    %s31 = scalar_lea.vmem [#allocation2], 3
    %v32 = vld [vmem:[%s31] ss:$4 sm:$0x3]
    %s33 = scalar_lea.vmem [#allocation2], 11
    %v34 = vld [vmem:[%s33] ss:$4 sm:$0x3]
    %v35 = vlaneseq
    %vm36 = vcmp.ge.s32.totalorder %v35, 0
    %vm37 = vcmp.lt.s32.totalorder %v35, 256
    %vm38 = vmand %vm36, %vm37
    %39 = vst.msk [vmem:[#allocation5] sm:$0x3] %vm38, %v32
    %40 = vst.msk [vmem:[#allocation5 + $0x2] sm:$0x3] %vm38, %v34
    // Predicated region
    $region10: #{tpu_custom_call.1} parent=1 // pred_check
      _
    $region11: #{tpu_custom_call.1} parent=1 // pred_check_branch
      %42 = sbr.rel (0) target = $region13
    $region12: #{tpu_custom_call.1} parent=1 // pred_region
      _
    $region13: #{tpu_custom_call.1} parent=1 // pred_fallthru
      _
    // Predicated region
    $region14: #{tpu_custom_call.1} parent=1 // pred_check
      _
    $region15: #{tpu_custom_call.1} parent=1 // pred_check_branch
      %44 = sbr.rel (0) target = $region17
    $region16: #{tpu_custom_call.1} parent=1 // pred_region
      %46 = vsyncadd [#allocation4], 0
      %s47 = sshll.u32 [#allocation5], 4
      %s48 = int_to_ptr.vmem [resolvable:$true] %s47
      %s49 = sshll.u32 %s2, 4
      %s50 = int_to_ptr.hbm [resolvable:$true] %s49
      %55 = dma.vmem_to_hbm [thread:$0]  %s48, 64, %s50, [#allocation4], 32, 32, 2
    $region17: #{tpu_custom_call.1} parent=1 // pred_fallthru
      _
    // Predicated region
    $region18: #{tpu_custom_call.1} parent=1 // pred_check
      _
    $region19: #{tpu_custom_call.1} parent=1 // pred_check_branch
      %57 = sbr.rel (0) target = $region21
    $region20: #{tpu_custom_call.1} parent=1 // pred_region
      _
    $region21: #{tpu_custom_call.1} parent=1 // pred_fallthru
      _
    // Predicated region
    $region22: #{tpu_custom_call.1} parent=1 // pred_check
      _
    $region23: #{tpu_custom_call.1} parent=1 // pred_check_branch
      %59 = sbr.rel (0) target = $region25
    $region24: #{tpu_custom_call.1} parent=1 // pred_region
      %61 = dma.done [#allocation4], 64
    $region25: #{tpu_custom_call.1} parent=1 // pred_fallthru
      _
    %62 = vsyncpa [#allocation3], 1
    %63 = vsyncpa [#allocation4], 1

</llo_original>
